<compile_context>
chip_gen: v7x
topology: tpu7x:2x2x1
jax: 0.10.0
libtpu: 0.0.40
codegen_flags: <defaults>
</compile_context>

<pallas_src>
import jax
import jax.numpy as jnp
from jax import lax
from jax.experimental import pallas as pl
from jax.experimental.pallas import tpu as pltpu


def _round_up(x, m):
    return ((x + m - 1) // m) * m


def _cdiv(a, b):
    return (a + b - 1) // b


def _vmem_capacity_bytes():
    """Best-effort physical VMEM per core; conservative 64 MiB (v7x) fallback."""
    try:
        info = pltpu.get_tpu_info()
        cap = getattr(info, "vmem_capacity_bytes", None)
        if cap:
            return int(cap)
    except Exception:
        pass
    try:
        kind = jax.devices()[0].device_kind.lower()
        if "v5" in kind or "v6" in kind:
            return 128 << 20
    except Exception:
        pass
    return 64 << 20


def _make_kernel(tk, n_valid, k_ragged, x_resident, compute_dtype, out_is_f32):
    def kernel(adj_ref, x_ref, out_ref, *scratch):
        k = pl.program_id(1)
        acc_ref = out_ref if out_is_f32 else scratch[0]

        @pl.when(k == 0)
        def _():
            acc_ref[...] = jnp.zeros_like(acc_ref)

        a = adj_ref[...]
        if k_ragged:
            # The last contraction tile overruns the (unpadded) adjacency:
            # zero the stale columns so they cannot contaminate the result.
            col = lax.broadcasted_iota(jnp.int32, a.shape, 1)
            a = jnp.where(col < (n_valid - k * tk), a, jnp.zeros_like(a))
        a = a.astype(compute_dtype)          # in-kernel cast -> bf16 MXU path

        if x_resident:
            start = pl.multiple_of(k * tk, tk)
            x_blk = x_ref[pl.ds(start, tk), :]
        else:
            x_blk = x_ref[...]

        acc_ref[...] += jnp.dot(a, x_blk, preferred_element_type=jnp.float32)

        if not out_is_f32:
            @pl.when(k == pl.num_programs(1) - 1)
            def _():
                out_ref[...] = acc_ref[...].astype(out_ref.dtype)

    return kernel


def avg_neighbor(seq, adj, *, compute_dtype=jnp.bfloat16):
    """seq: (1, N, F), adj: (N, N) -> (1, N, F) == adj @ seq[0], unsqueezed."""
    assert seq.ndim == 3 and seq.shape[0] == 1
    N, F = seq.shape[1], seq.shape[2]
    assert adj.shape == (N, N)
    out_dtype = seq.dtype
    out_is_f32 = out_dtype == jnp.float32
    adj_itemsize = jnp.dtype(adj.dtype).itemsize
    out_itemsize = jnp.dtype(out_dtype).itemsize

    # ---- per-generation tile selection --------------------------------------
    vmem_cap = _vmem_capacity_bytes()
    big_vmem = vmem_cap >= (100 << 20)          # v5e / v6e (128 MiB) vs v7x (64 MiB)
    vmem_limit = (96 << 20) if big_vmem else (48 << 20)
    budget = vmem_limit - (12 << 20)            # headroom for compiler scratch
    tm_cap = 1024 if big_vmem else 512
    tk_cap = 2048 if big_vmem else 1024

    Fp = _round_up(F, 128)

    # Keep the (small) feature matrix whole-array VMEM-resident when it fits
    # comfortably: it is then DMA'd once instead of once per row panel.
    x_bytes_proxy = _round_up(N, 256) * Fp * 2
    x_resident = 2 * x_bytes_proxy <= min(12 << 20, budget // 3)

    # tm: multiple of 256; keep >= 2 row panels when possible so the "parallel"
    # i axis can shard across TensorCores on v7x (splitting is ~free whenever
    # the feature matrix is resident).
    m_panels = _cdiv(N, 256)
    tm_panels = min(tm_cap // 256, m_panels)
    if m_panels > 1 and (not big_vmem or x_resident):
        tm_panels = min(tm_panels, _cdiv(m_panels, 2))
    tm = 256 * max(1, tm_panels)

    # tk: as large as the VMEM budget allows (multiple of 256).
    fixed = 2 * tm * Fp * 4                     # output / accumulator, double-buffered
    if not out_is_f32:
        fixed += tm * Fp * 4                    # extra f32 scratch accumulator
    if x_resident:
        fixed += 2 * x_bytes_proxy
    per_tk = 2 * tm * adj_itemsize              # adj double buffer, per contraction col
    if not x_resident:
        per_tk += 2 * Fp * 2                    # streamed bf16 feature double buffer
    tk_from_budget = max(budget - fixed, 0) // max(per_tk, 1)
    tk = 256 * max(1, min(tk_cap // 256, tk_from_budget // 256, _cdiv(N, 256)))

    grid_i = _cdiv(N, tm)
    grid_k = _cdiv(N, tk)
    Nm = grid_i * tm                            # padded output-row dim
    Nkp = grid_k * tk                           # padded contraction dim (x only)
    k_ragged = (N % tk) != 0

    # ---- wrapper-side prep: only the small (N, F) operand; adj untouched ----
    x = jnp.squeeze(seq, 0).astype(compute_dtype)
    if (Nkp, Fp) != (N, F):
        x = jnp.pad(x, ((0, Nkp - N), (0, Fp - F)))

    in_specs = [pl.BlockSpec((tm, tk), lambda i, k: (i, k))]           # adj, stored dtype
    if x_resident:
        in_specs.append(pl.BlockSpec((Nkp, Fp), lambda i, k: (0, 0)))  # whole, resident
    else:
        in_specs.append(pl.BlockSpec((tk, Fp), lambda i, k: (k, 0)))
    out_spec = pl.BlockSpec((tm, Fp), lambda i, k: (i, 0))
    scratch = [] if out_is_f32 else [pltpu.VMEM((tm, Fp), jnp.float32)]

    cost = pl.CostEstimate(
        flops=2 * N * N * F,
        transcendentals=0,
        bytes_accessed=N * N * adj_itemsize + N * F * 2 + N * F * out_itemsize,
    )

    kernel = _make_kernel(tk, N, k_ragged, x_resident, compute_dtype, out_is_f32)

    out2d = pl.pallas_call(
        kernel,
        out_shape=jax.ShapeDtypeStruct((Nm, Fp), out_dtype),
        grid_spec=pltpu.PrefetchScalarGridSpec(
            num_scalar_prefetch=0,
            grid=(grid_i, grid_k),
            in_specs=in_specs,
            out_specs=out_spec,
            scratch_shapes=scratch,
        ),
        compiler_params=pltpu.CompilerParams(
            dimension_semantics=("parallel", "arbitrary"),
            vmem_limit_bytes=int(vmem_limit),
        ),
        cost_estimate=cost,
    )(adj, x)

    if (Nm, Fp) != (N, F):
        out2d = out2d[:N, :F]

    return jnp.expand_dims(out2d, 0)  # (1, N, F)


if __name__ == "__main__":
    # Small, module-consistent shapes: N nodes, F features.
    N, F = 256, 128
    key = jax.random.PRNGKey(0)
    k1, k2 = jax.random.split(key)

    # Deterministic node features.
    seq = jax.random.normal(k1, (1, N, F), dtype=jnp.float32)

    # Deterministic "sparse" adjacency, densified and row-normalized
    # (so it truly averages over neighbors, matching the module's intent).
    raw = jax.random.uniform(k2, (N, N), dtype=jnp.float32)
    mask = (raw < 0.05).astype(jnp.float32)        # ~5% density
    mask = mask + jnp.eye(N, dtype=jnp.float32)    # self-loops so no empty rows
    row_sum = jnp.sum(mask, axis=1, keepdims=True)
    adj = mask / row_sum                           # row-normalized dense adjacency

    out = avg_neighbor(seq, adj)
    out = jax.block_until_ready(out)
    assert out.shape == (1, N, F)

    x = jnp.squeeze(seq, 0)

    # Check 1: bf16-input / f32-accumulation reference (same numerics as the
    # kernel's MXU path) -- tight tolerance.
    ref_bf16 = lax.dot(
        adj.astype(jnp.bfloat16),
        x.astype(jnp.bfloat16),
        preferred_element_type=jnp.float32,
    )
    assert jnp.allclose(out[0], ref_bf16, atol=1e-3, rtol=1e-3)

    # Check 2: full-f32 reference of the original module -- loose tolerance
    # covering the bf16 quantization of adj/seq in the compute path.
    ref_f32 = adj @ x
    assert jnp.allclose(out[0], ref_f32, atol=3e-2, rtol=3e-2)

    print("KERNEL_OK")
</pallas_src>

<mosaic_0001>
module attributes {stable_mosaic.version = 11 : i64} {
  func.func @kernel(%arg0: i32, %arg1: i32, %arg2: memref<256x256xf32, #tpu.memory_space<vmem>>, %arg3: memref<256x128xbf16, #tpu.memory_space<vmem>>, %arg4: memref<256x128xf32, #tpu.memory_space<vmem>>) attributes {dimension_semantics = [#tpu.dimension_semantics<parallel>, #tpu.dimension_semantics<arbitrary>], iteration_bounds = array<i64: 1, 1>, scalar_prefetch = 0 : i64, scratch_operands = 0 : i64, tpu.core_type = #tpu.core_type<tc>, window_params = [{transform_indices = @transform_0, window_bounds = array<i64: 256, 256>}, {pipeline_mode = #tpu.pipeline_mode<synchronous>, transform_indices = @transform_1, window_bounds = array<i64: 256, 128>}, {transform_indices = @transform_2, window_bounds = array<i64: 256, 128>}]} {
    %c0_i32 = arith.constant 0 : i32
    %0 = arith.cmpi eq, %arg1, %c0_i32 : i32
    %1 = arith.extui %0 : i1 to i32
    %c0_i32_0 = arith.constant 0 : i32
    %2 = arith.cmpi ne, %1, %c0_i32_0 : i32
    scf.if %2 {
      %cst_7 = arith.constant 0.000000e+00 : f32
      %13 = vector.broadcast %cst_7 : f32 to vector<256x128xf32>
      %c0_8 = arith.constant 0 : index
      %c0_9 = arith.constant 0 : index
      %14 = vector.load %arg4[%c0_8, %c0_9] : memref<256x128xf32, #tpu.memory_space<vmem>>, vector<256x128xf32>
      tpu.vector_store %arg4[%c0_8, %c0_9], %13 {strides = array<i32>} : memref<256x128xf32, #tpu.memory_space<vmem>>, vector<256x128xf32>,
    } else {
    }
    %c0 = arith.constant 0 : index
    %c0_1 = arith.constant 0 : index
    %3 = vector.load %arg2[%c0, %c0_1] : memref<256x256xf32, #tpu.memory_space<vmem>>, vector<256x256xf32>
    %4 = arith.truncf %3 : vector<256x256xf32> to vector<256x256xbf16>
    %c256_i32 = arith.constant 256 : i32
    %5 = arith.muli %arg1, %c256_i32 : i32
    %6 = tpu.assume_multiple %5, 256 : i32
    %7 = arith.index_cast %6 : i32 to index
    %c0_2 = arith.constant 0 : index
    %8 = vector.load %arg3[%7, %c0_2] : memref<256x128xbf16, #tpu.memory_space<vmem>>, vector<256x128xbf16>
    %c0_3 = arith.constant 0 : index
    %c0_4 = arith.constant 0 : index
    %9 = vector.load %arg4[%c0_3, %c0_4] : memref<256x128xf32, #tpu.memory_space<vmem>>, vector<256x128xf32>
    %cst = arith.constant dense<0.000000e+00> : vector<256x128xf32>
    %10 = tpu.matmul %4, %8, %cst {dimension_numbers = #tpu.dot_dimension_numbers<[1], [0], [0], [1], [0, 0, 1, 1], [], []>} : vector<256x256xbf16>, vector<256x128xbf16>, vector<256x128xf32> -> vector<256x128xf32>
    %11 = arith.addf %9, %10 : vector<256x128xf32>
    %c0_5 = arith.constant 0 : index
    %c0_6 = arith.constant 0 : index
    %12 = vector.load %arg4[%c0_5, %c0_6] : memref<256x128xf32, #tpu.memory_space<vmem>>, vector<256x128xf32>
    tpu.vector_store %arg4[%c0_5, %c0_6], %11 {strides = array<i32>} : memref<256x128xf32, #tpu.memory_space<vmem>>, vector<256x128xf32>,
    return
  }
  func.func @transform_0(%arg0: i32, %arg1: i32) -> (i32, i32) {
    %c0_i32 = arith.constant 0 : i32
    return %arg0, %arg1 : i32, i32
  }
  func.func @transform_1(%arg0: i32, %arg1: i32) -> (i32, i32) {
    %c0_i32 = arith.constant 0 : i32
    %c0_i32_0 = arith.constant 0 : i32
    %c0_i32_1 = arith.constant 0 : i32
    return %c0_i32, %c0_i32_0 : i32, i32
  }
  func.func @transform_2(%arg0: i32, %arg1: i32) -> (i32, i32) {
    %c0_i32 = arith.constant 0 : i32
    %c0_i32_0 = arith.constant 0 : i32
    return %arg0, %c0_i32 : i32, i32
  }
}

</mosaic_0001>

<llo_original>
// kernel: tpu_custom_call.1
$region0: #{tpu_custom_call.1}
  #allocation0 [shape = 'u32[]', space=smem, size = 0x4, offset = 0x4, fixed_abs, tag = 'smem constant byte address 0x4 - core index']
  #allocation1 [shape = 'u32[144,128]{1,0:T(1,128)}', space=vmem, size = 0x12000, scoped, tag = 'internal scratch']
  %s0 = inlined_call_operand.hbm [shape: f32[256,256], index: 0, kind: input, shape index: {}]
  %s1 = inlined_call_operand.hbm [shape: bf16[256,128], index: 1, kind: input, shape index: {}]
  %s2 = inlined_call_operand.hbm [shape: f32[256,128], index: 2, kind: output, shape index: {}]
  %s3 = sld [smem:[#allocation0]]
  $region30: #{tpu_custom_call.1} parent=0
    _
  %s5 = ssub.s32 1, %s3
  %s6 = scalar_select 0, %s5, %s3
  $region1: #{tpu_custom_call.1} parent=0
    #allocation2 [shape = 'u8[262144]{0}', space=vmem, size = 0x40000, scoped, tag = 'input window, operand 0, single buffered']
    #allocation3 [shape = 's32[1]{0}', space=sflag, size = 0x4, scoped, tag = 'scoped memory for tpu_custom_call.1']
    #allocation4 [shape = 's32[1]{0}', space=sflag, size = 0x4, scoped, tag = 'scoped memory for tpu_custom_call.1']
    #allocation5 [shape = 'u8[65536]{0}', space=vmem, size = 0x10000, scoped, tag = 'input window, operand 1, single buffered']
    #allocation6 [shape = 's32[1]{0}', space=sflag, size = 0x4, scoped, tag = 'scoped memory for tpu_custom_call.1']
    #allocation7 [shape = 'u8[131072]{0}', space=vmem, size = 0x20000, scoped, tag = 'output window, operand 0, single buffered']
    %7 = vsyncpa [#allocation3], 0
    %8 = vsyncpa [#allocation6], 0
    %9 = vsyncpa [#allocation4], 0
    // Predicated region
    $region2: #{tpu_custom_call.1} parent=1 // pred_check
      _
    $region3: #{tpu_custom_call.1} parent=1 // pred_check_branch
      %11 = sbr.rel (0) target = $region5
    $region4: #{tpu_custom_call.1} parent=1 // pred_region
      %s13 = ssub.s32 8192, 8192
      %14 = vsyncadd [#allocation3], %s13
      %s15 = sshll.u32 [#allocation2], 4
      %s16 = int_to_ptr.vmem [resolvable:$true] %s15
      %21 = dma.hbm_to_vmem [thread:$0]  %s0, 8192, %s16, [#allocation3], 256, 256, 16
    $region5: #{tpu_custom_call.1} parent=1 // pred_fallthru
      _
    // Predicated region
    $region6: #{tpu_custom_call.1} parent=1 // pred_check
      _
    $region7: #{tpu_custom_call.1} parent=1 // pred_check_branch
      %23 = sbr.rel (0) target = $region9
    $region8: #{tpu_custom_call.1} parent=1 // pred_region
      %s25 = ssub.s32 2048, 2048
      %26 = vsyncadd [#allocation6], %s25
      %s27 = sshll.u32 [#allocation5], 4
      %s28 = int_to_ptr.vmem [resolvable:$true] %s27
      %33 = dma.hbm_to_vmem [thread:$0]  %s1, 2048, %s28, [#allocation6], 64, 64, 4
    $region9: #{tpu_custom_call.1} parent=1 // pred_fallthru
      _
    // Predicated region
    $region10: #{tpu_custom_call.1} parent=1 // pred_check
      _
    $region11: #{tpu_custom_call.1} parent=1 // pred_check_branch
      %35 = sbr.rel (0) target = $region13
    $region12: #{tpu_custom_call.1} parent=1 // pred_region
      %36 = dma.done [#allocation3], 8192
    $region13: #{tpu_custom_call.1} parent=1 // pred_fallthru
      _
    // Predicated region
    $region14: #{tpu_custom_call.1} parent=1 // pred_check
      _
    $region15: #{tpu_custom_call.1} parent=1 // pred_check_branch
      %38 = sbr.rel (0) target = $region17
    $region16: #{tpu_custom_call.1} parent=1 // pred_region
      %39 = dma.done [#allocation6], 2048
    $region17: #{tpu_custom_call.1} parent=1 // pred_fallthru
      _
    %p41 = scmp.eq.s32.totalorder 0, 0
    // Predicated region
    $region18: #{tpu_custom_call.1} parent=1 // pred_check
      %p42 = pneg %p41
    $region19: #{tpu_custom_call.1} parent=1 // pred_check_branch
      %44 = sbr.rel (%p42) target = $region21
    $region20: #{tpu_custom_call.1} parent=1 // pred_region
      %45 = vst [vmem:[#allocation7] sm:$0xff] 0.0
      %46 = vst [vmem:[#allocation7 + $0x8] sm:$0xff] 0.0
      %47 = vst [vmem:[#allocation7 + $0x10] sm:$0xff] 0.0
      %48 = vst [vmem:[#allocation7 + $0x18] sm:$0xff] 0.0
      %49 = vst [vmem:[#allocation7 + $0x20] sm:$0xff] 0.0
      %50 = vst [vmem:[#allocation7 + $0x28] sm:$0xff] 0.0
      %51 = vst [vmem:[#allocation7 + $0x30] sm:$0xff] 0.0
      %52 = vst [vmem:[#allocation7 + $0x38] sm:$0xff] 0.0
      %53 = vst [vmem:[#allocation7 + $0x40] sm:$0xff] 0.0
      %54 = vst [vmem:[#allocation7 + $0x48] sm:$0xff] 0.0
      %55 = vst [vmem:[#allocation7 + $0x50] sm:$0xff] 0.0
      %56 = vst [vmem:[#allocation7 + $0x58] sm:$0xff] 0.0
      %57 = vst [vmem:[#allocation7 + $0x60] sm:$0xff] 0.0
      %58 = vst [vmem:[#allocation7 + $0x68] sm:$0xff] 0.0
      %59 = vst [vmem:[#allocation7 + $0x70] sm:$0xff] 0.0
      %60 = vst [vmem:[#allocation7 + $0x78] sm:$0xff] 0.0
      %61 = vst [vmem:[#allocation7 + $0x80] sm:$0xff] 0.0
      %62 = vst [vmem:[#allocation7 + $0x88] sm:$0xff] 0.0
      %63 = vst [vmem:[#allocation7 + $0x90] sm:$0xff] 0.0
      %64 = vst [vmem:[#allocation7 + $0x98] sm:$0xff] 0.0
      %65 = vst [vmem:[#allocation7 + $0xa0] sm:$0xff] 0.0
      %66 = vst [vmem:[#allocation7 + $0xa8] sm:$0xff] 0.0
      %67 = vst [vmem:[#allocation7 + $0xb0] sm:$0xff] 0.0
      %68 = vst [vmem:[#allocation7 + $0xb8] sm:$0xff] 0.0
      %69 = vst [vmem:[#allocation7 + $0xc0] sm:$0xff] 0.0
      %70 = vst [vmem:[#allocation7 + $0xc8] sm:$0xff] 0.0
      %71 = vst [vmem:[#allocation7 + $0xd0] sm:$0xff] 0.0
      %72 = vst [vmem:[#allocation7 + $0xd8] sm:$0xff] 0.0
      %73 = vst [vmem:[#allocation7 + $0xe0] sm:$0xff] 0.0
      %74 = vst [vmem:[#allocation7 + $0xe8] sm:$0xff] 0.0
      %75 = vst [vmem:[#allocation7 + $0xf0] sm:$0xff] 0.0
      %76 = vst [vmem:[#allocation7 + $0xf8] sm:$0xff] 0.0
    $region21: #{tpu_custom_call.1} parent=1 // pred_fallthru
      _
    %v77 = vld [vmem:[#allocation2] sm:$0xff]
    %v78 = vld [vmem:[#allocation2 + $0x8] sm:$0xff]
    %v79 = vld [vmem:[#allocation2 + $0x10] sm:$0xff]
    %v80 = vld [vmem:[#allocation2 + $0x18] sm:$0xff]
    %v81 = vld [vmem:[#allocation2 + $0x20] sm:$0xff]
    %v82 = vld [vmem:[#allocation2 + $0x28] sm:$0xff]
    %v83 = vld [vmem:[#allocation2 + $0x30] sm:$0xff]
    %v84 = vld [vmem:[#allocation2 + $0x38] sm:$0xff]
    %v85 = vld [vmem:[#allocation2 + $0x40] sm:$0xff]
    %v86 = vld [vmem:[#allocation2 + $0x48] sm:$0xff]
    %v87 = vld [vmem:[#allocation2 + $0x50] sm:$0xff]
    %v88 = vld [vmem:[#allocation2 + $0x58] sm:$0xff]
    %v89 = vld [vmem:[#allocation2 + $0x60] sm:$0xff]
    %v90 = vld [vmem:[#allocation2 + $0x68] sm:$0xff]
    %v91 = vld [vmem:[#allocation2 + $0x70] sm:$0xff]
    %v92 = vld [vmem:[#allocation2 + $0x78] sm:$0xff]
    %v93 = vld [vmem:[#allocation2 + $0x80] sm:$0xff]
    %v94 = vld [vmem:[#allocation2 + $0x88] sm:$0xff]
    %v95 = vld [vmem:[#allocation2 + $0x90] sm:$0xff]
    %v96 = vld [vmem:[#allocation2 + $0x98] sm:$0xff]
    %v97 = vld [vmem:[#allocation2 + $0xa0] sm:$0xff]
    %v98 = vld [vmem:[#allocation2 + $0xa8] sm:$0xff]
    %v99 = vld [vmem:[#allocation2 + $0xb0] sm:$0xff]
    %v100 = vld [vmem:[#allocation2 + $0xb8] sm:$0xff]
    %v101 = vld [vmem:[#allocation2 + $0xc0] sm:$0xff]
    %v102 = vld [vmem:[#allocation2 + $0xc8] sm:$0xff]
    %v103 = vld [vmem:[#allocation2 + $0xd0] sm:$0xff]
    %v104 = vld [vmem:[#allocation2 + $0xd8] sm:$0xff]
    %v105 = vld [vmem:[#allocation2 + $0xe0] sm:$0xff]
    %v106 = vld [vmem:[#allocation2 + $0xe8] sm:$0xff]
    %v107 = vld [vmem:[#allocation2 + $0xf0] sm:$0xff]
    %v108 = vld [vmem:[#allocation2 + $0xf8] sm:$0xff]
    %v109 = vld [vmem:[#allocation2 + $0x100] sm:$0xff]
    %v110 = vld [vmem:[#allocation2 + $0x108] sm:$0xff]
    %v111 = vld [vmem:[#allocation2 + $0x110] sm:$0xff]
    %v112 = vld [vmem:[#allocation2 + $0x118] sm:$0xff]
    %v113 = vld [vmem:[#allocation2 + $0x120] sm:$0xff]
    %v114 = vld [vmem:[#allocation2 + $0x128] sm:$0xff]
    %v115 = vld [vmem:[#allocation2 + $0x130] sm:$0xff]
    %v116 = vld [vmem:[#allocation2 + $0x138] sm:$0xff]
    %v117 = vld [vmem:[#allocation2 + $0x140] sm:$0xff]
    %v118 = vld [vmem:[#allocation2 + $0x148] sm:$0xff]
    %v119 = vld [vmem:[#allocation2 + $0x150] sm:$0xff]
    %v120 = vld [vmem:[#allocation2 + $0x158] sm:$0xff]
    %v121 = vld [vmem:[#allocation2 + $0x160] sm:$0xff]
    %v122 = vld [vmem:[#allocation2 + $0x168] sm:$0xff]
    %v123 = vld [vmem:[#allocation2 + $0x170] sm:$0xff]
    %v124 = vld [vmem:[#allocation2 + $0x178] sm:$0xff]
    %v125 = vld [vmem:[#allocation2 + $0x180] sm:$0xff]
    %v126 = vld [vmem:[#allocation2 + $0x188] sm:$0xff]
    %v127 = vld [vmem:[#allocation2 + $0x190] sm:$0xff]
    %v128 = vld [vmem:[#allocation2 + $0x198] sm:$0xff]
    %v129 = vld [vmem:[#allocation2 + $0x1a0] sm:$0xff]
    %v130 = vld [vmem:[#allocation2 + $0x1a8] sm:$0xff]
    %v131 = vld [vmem:[#allocation2 + $0x1b0] sm:$0xff]
    %v132 = vld [vmem:[#allocation2 + $0x1b8] sm:$0xff]
    %v133 = vld [vmem:[#allocation2 + $0x1c0] sm:$0xff]
    %v134 = vld [vmem:[#allocation2 + $0x1c8] sm:$0xff]
    %v135 = vld [vmem:[#allocation2 + $0x1d0] sm:$0xff]
    %v136 = vld [vmem:[#allocation2 + $0x1d8] sm:$0xff]
    %v137 = vld [vmem:[#allocation2 + $0x1e0] sm:$0xff]
    %v138 = vld [vmem:[#allocation2 + $0x1e8] sm:$0xff]
    %v139 = vld [vmem:[#allocation2 + $0x1f0] sm:$0xff]
    %v140 = vld [vmem:[#allocation2 + $0x1f8] sm:$0xff]
    %v141 = vpack.c.bf16 %v79, %v77
    %v142 = vpack.c.bf16 %v80, %v78
    %v143 = vpack.c.bf16 %v83, %v81
    %v144 = vpack.c.bf16 %v84, %v82
    %v145 = vpack.c.bf16 %v87, %v85
    %v146 = vpack.c.bf16 %v88, %v86
    %v147 = vpack.c.bf16 %v91, %v89
    %v148 = vpack.c.bf16 %v92, %v90
    %v149 = vpack.c.bf16 %v95, %v93
    %v150 = vpack.c.bf16 %v96, %v94
    %v151 = vpack.c.bf16 %v99, %v97
    %v152 = vpack.c.bf16 %v100, %v98
    %v153 = vpack.c.bf16 %v103, %v101
    %v154 = vpack.c.bf16 %v104, %v102
    %v155 = vpack.c.bf16 %v107, %v105
    %v156 = vpack.c.bf16 %v108, %v106
    %v157 = vpack.c.bf16 %v111, %v109
    %v158 = vpack.c.bf16 %v112, %v110
    %v159 = vpack.c.bf16 %v115, %v113
    %v160 = vpack.c.bf16 %v116, %v114
    %v161 = vpack.c.bf16 %v119, %v117
    %v162 = vpack.c.bf16 %v120, %v118
    %v163 = vpack.c.bf16 %v123, %v121
    %v164 = vpack.c.bf16 %v124, %v122
    %v165 = vpack.c.bf16 %v127, %v125
    %v166 = vpack.c.bf16 %v128, %v126
    %v167 = vpack.c.bf16 %v131, %v129
    %v168 = vpack.c.bf16 %v132, %v130
    %v169 = vpack.c.bf16 %v135, %v133
    %v170 = vpack.c.bf16 %v136, %v134
    %v171 = vpack.c.bf16 %v139, %v137
    %v172 = vpack.c.bf16 %v140, %v138
    %s173 = smul.u32 0, 256
    %s174 = sshra.s32 %s173, 3
    %s175 = sand.u32 %s173, 7
    %s176 = smul.addr %s174, 4
    %s177 = scalar_lea.vmem [#allocation5], %s176
    %v178 = vld [vmem:[%s177] sm:$0xf]
    %v179 = vld [vmem:[%s177 + $0x4] sm:$0xf]
    %v180 = vld [vmem:[%s177 + $0x8] sm:$0xf]
    %v181 = vld [vmem:[%s177 + $0xc] sm:$0xf]
    %v182 = vld [vmem:[%s177 + $0x10] sm:$0xf]
    %v183 = vld [vmem:[%s177 + $0x14] sm:$0xf]
    %v184 = vld [vmem:[%s177 + $0x18] sm:$0xf]
    %v185 = vld [vmem:[%s177 + $0x1c] sm:$0xf]
    %v186 = vld [vmem:[%s177 + $0x20] sm:$0xf]
    %v187 = vld [vmem:[%s177 + $0x24] sm:$0xf]
    %v188 = vld [vmem:[%s177 + $0x28] sm:$0xf]
    %v189 = vld [vmem:[%s177 + $0x2c] sm:$0xf]
    %v190 = vld [vmem:[%s177 + $0x30] sm:$0xf]
    %v191 = vld [vmem:[%s177 + $0x34] sm:$0xf]
    %v192 = vld [vmem:[%s177 + $0x38] sm:$0xf]
    %v193 = vld [vmem:[%s177 + $0x3c] sm:$0xf]
    %v194 = vld [vmem:[%s177 + $0x40] sm:$0xf]
    %v195 = vld [vmem:[%s177 + $0x44] sm:$0xf]
    %v196 = vld [vmem:[%s177 + $0x48] sm:$0xf]
    %v197 = vld [vmem:[%s177 + $0x4c] sm:$0xf]
    %v198 = vld [vmem:[%s177 + $0x50] sm:$0xf]
    %v199 = vld [vmem:[%s177 + $0x54] sm:$0xf]
    %v200 = vld [vmem:[%s177 + $0x58] sm:$0xf]
    %v201 = vld [vmem:[%s177 + $0x5c] sm:$0xf]
    %v202 = vld [vmem:[%s177 + $0x60] sm:$0xf]
    %v203 = vld [vmem:[%s177 + $0x64] sm:$0xf]
    %v204 = vld [vmem:[%s177 + $0x68] sm:$0xf]
    %v205 = vld [vmem:[%s177 + $0x6c] sm:$0xf]
    %v206 = vld [vmem:[%s177 + $0x70] sm:$0xf]
    %v207 = vld [vmem:[%s177 + $0x74] sm:$0xf]
    %v208 = vld [vmem:[%s177 + $0x78] sm:$0xf]
    %v209 = vld [vmem:[%s177 + $0x7c] sm:$0xf]
    %v210 = vld [vmem:[#allocation7] sm:$0xff]
    %v211 = vld [vmem:[#allocation7 + $0x8] sm:$0xff]
    %v212 = vld [vmem:[#allocation7 + $0x10] sm:$0xff]
    %v213 = vld [vmem:[#allocation7 + $0x18] sm:$0xff]
    %v214 = vld [vmem:[#allocation7 + $0x20] sm:$0xff]
    %v215 = vld [vmem:[#allocation7 + $0x28] sm:$0xff]
    %v216 = vld [vmem:[#allocation7 + $0x30] sm:$0xff]
    %v217 = vld [vmem:[#allocation7 + $0x38] sm:$0xff]
    %v218 = vld [vmem:[#allocation7 + $0x40] sm:$0xff]
    %v219 = vld [vmem:[#allocation7 + $0x48] sm:$0xff]
    %v220 = vld [vmem:[#allocation7 + $0x50] sm:$0xff]
    %v221 = vld [vmem:[#allocation7 + $0x58] sm:$0xff]
    %v222 = vld [vmem:[#allocation7 + $0x60] sm:$0xff]
    %v223 = vld [vmem:[#allocation7 + $0x68] sm:$0xff]
    %v224 = vld [vmem:[#allocation7 + $0x70] sm:$0xff]
    %v225 = vld [vmem:[#allocation7 + $0x78] sm:$0xff]
    %v226 = vld [vmem:[#allocation7 + $0x80] sm:$0xff]
    %v227 = vld [vmem:[#allocation7 + $0x88] sm:$0xff]
    %v228 = vld [vmem:[#allocation7 + $0x90] sm:$0xff]
    %v229 = vld [vmem:[#allocation7 + $0x98] sm:$0xff]
    %v230 = vld [vmem:[#allocation7 + $0xa0] sm:$0xff]
    %v231 = vld [vmem:[#allocation7 + $0xa8] sm:$0xff]
    %v232 = vld [vmem:[#allocation7 + $0xb0] sm:$0xff]
    %v233 = vld [vmem:[#allocation7 + $0xb8] sm:$0xff]
    %v234 = vld [vmem:[#allocation7 + $0xc0] sm:$0xff]
    %v235 = vld [vmem:[#allocation7 + $0xc8] sm:$0xff]
    %v236 = vld [vmem:[#allocation7 + $0xd0] sm:$0xff]
    %v237 = vld [vmem:[#allocation7 + $0xd8] sm:$0xff]
    %v238 = vld [vmem:[#allocation7 + $0xe0] sm:$0xff]
    %v239 = vld [vmem:[#allocation7 + $0xe8] sm:$0xff]
    %v240 = vld [vmem:[#allocation7 + $0xf0] sm:$0xff]
    %v241 = vld [vmem:[#allocation7 + $0xf8] sm:$0xff]
    %v274 = vunpack.c.l.b16 %v178
    %v275 = vunpack.c.l.b16 %v179
    %v276 = vunpack.c.l.b16 %v180
    %v277 = vunpack.c.l.b16 %v181
    %v278 = vunpack.c.l.b16 %v182
    %v279 = vunpack.c.l.b16 %v183
    %v280 = vunpack.c.l.b16 %v184
    %v281 = vunpack.c.l.b16 %v185
    %v282 = vunpack.c.l.b16 %v186
    %v283 = vunpack.c.l.b16 %v187
    %v284 = vunpack.c.l.b16 %v188
    %v285 = vunpack.c.l.b16 %v189
    %v286 = vunpack.c.l.b16 %v190
    %v287 = vunpack.c.l.b16 %v191
    %v288 = vunpack.c.l.b16 %v192
    %v289 = vunpack.c.l.b16 %v193
    %v290 = vunpack.c.l.b16 %v194
    %v291 = vunpack.c.l.b16 %v195
    %v292 = vunpack.c.l.b16 %v196
    %v293 = vunpack.c.l.b16 %v197
    %v294 = vunpack.c.l.b16 %v198
    %v295 = vunpack.c.l.b16 %v199
    %v296 = vunpack.c.l.b16 %v200
    %v297 = vunpack.c.l.b16 %v201
    %v298 = vunpack.c.l.b16 %v202
    %v299 = vunpack.c.l.b16 %v203
    %v300 = vunpack.c.l.b16 %v204
    %v301 = vunpack.c.l.b16 %v205
    %v302 = vunpack.c.l.b16 %v206
    %v303 = vunpack.c.l.b16 %v207
    %v304 = vunpack.c.l.b16 %v208
    %v305 = vunpack.c.l.b16 %v209
    %v306 = vpack.c.b16 %v275, %v274
    %v307 = vpack.c.b16 %v277, %v276
    %v308 = vpack.c.b16 %v279, %v278
    %v309 = vpack.c.b16 %v281, %v280
    %v310 = vpack.c.b16 %v283, %v282
    %v311 = vpack.c.b16 %v285, %v284
    %v312 = vpack.c.b16 %v287, %v286
    %v313 = vpack.c.b16 %v289, %v288
    %v314 = vpack.c.b16 %v291, %v290
    %v315 = vpack.c.b16 %v293, %v292
    %v316 = vpack.c.b16 %v295, %v294
    %v317 = vpack.c.b16 %v297, %v296
    %v318 = vpack.c.b16 %v299, %v298
    %v319 = vpack.c.b16 %v301, %v300
    %v320 = vpack.c.b16 %v303, %v302
    %v321 = vpack.c.b16 %v305, %v304
    %338 = vmatprep.subr.bf16.mxu0 0
    %339 = vmatpush1.bf16.msra.mxu0 %v306
    %340 = vmatprep.subr.bf16.mxu0 0
    %341 = vmatpush1.bf16.msra.mxu0 %v307
    %342 = vmatprep.subr.bf16.mxu0 0
    %343 = vmatpush1.bf16.msra.mxu0 %v308
    %344 = vmatprep.subr.bf16.mxu0 0
    %345 = vmatpush1.bf16.msra.mxu0 %v309
    %346 = vmatprep.subr.bf16.mxu0 0
    %347 = vmatpush1.bf16.msra.mxu0 %v310
    %348 = vmatprep.subr.bf16.mxu0 0
    %349 = vmatpush1.bf16.msra.mxu0 %v311
    %350 = vmatprep.subr.bf16.mxu0 0
    %351 = vmatpush1.bf16.msra.mxu0 %v312
    %352 = vmatprep.subr.bf16.mxu0 0
    %353 = vmatpush1.bf16.msra.mxu0 %v313
    %354 = vmatprep.subr.bf16.mxu0 0
    %355 = vmatpush1.bf16.msra.mxu0 %v314
    %356 = vmatprep.subr.bf16.mxu0 0
    %357 = vmatpush1.bf16.msra.mxu0 %v315
    %358 = vmatprep.subr.bf16.mxu0 0
    %359 = vmatpush1.bf16.msra.mxu0 %v316
    %360 = vmatprep.subr.bf16.mxu0 0
    %361 = vmatpush1.bf16.msra.mxu0 %v317
    %362 = vmatprep.subr.bf16.mxu0 0
    %363 = vmatpush1.bf16.msra.mxu0 %v318
    %364 = vmatprep.subr.bf16.mxu0 0
    %365 = vmatpush1.bf16.msra.mxu0 %v319
    %366 = vmatprep.subr.bf16.mxu0 0
    %367 = vmatpush1.bf16.msra.mxu0 %v320
    %368 = vmatprep.subr.bf16.mxu0 0
    %369 = vmatpush1.bf16.msra.mxu0 %v321
    %370 = vmatprep.mubr.bf16.mxu0 %v142
    %371 = vmatmul.mubr.bf16.gmra.mrb[0].mxu0 %v141
    %v372 = vpop.f32.mrb[0].mxu0
    %v373 = vadd.f32 0.0, %v372
    %v374 = vpop.f32.mrb[0].mxu0
    %v375 = vpop.f32.mrb[0].mxu0
    %v376 = vadd.f32 0.0, %v375
    %v377 = vpop.f32.mrb[0].mxu0
    %378 = vmatprep.mubr.bf16.mxu0 %v144
    %379 = vmatmul.mubr.bf16.gmra.mrb[0].mxu0 %v143
    %v380 = vpop.f32.mrb[0].mxu0
    %v381 = vadd.f32 0.0, %v380
    %v382 = vpop.f32.mrb[0].mxu0
    %v383 = vpop.f32.mrb[0].mxu0
    %v384 = vadd.f32 0.0, %v383
    %v385 = vpop.f32.mrb[0].mxu0
    %386 = vmatprep.mubr.bf16.mxu0 %v146
    %387 = vmatmul.mubr.bf16.gmra.mrb[0].mxu0 %v145
    %v388 = vpop.f32.mrb[0].mxu0
    %v389 = vadd.f32 0.0, %v388
    %v390 = vpop.f32.mrb[0].mxu0
    %v391 = vpop.f32.mrb[0].mxu0
    %v392 = vadd.f32 0.0, %v391
    %v393 = vpop.f32.mrb[0].mxu0
    %394 = vmatprep.mubr.bf16.mxu0 %v148
    %395 = vmatmul.mubr.bf16.gmra.mrb[0].mxu0 %v147
    %v396 = vpop.f32.mrb[0].mxu0
    %v397 = vadd.f32 0.0, %v396
    %v398 = vpop.f32.mrb[0].mxu0
    %v399 = vpop.f32.mrb[0].mxu0
    %v400 = vadd.f32 0.0, %v399
    %v401 = vpop.f32.mrb[0].mxu0
    %402 = vmatprep.mubr.bf16.mxu0 %v150
    %403 = vmatmul.mubr.bf16.gmra.mrb[0].mxu0 %v149
    %v404 = vpop.f32.mrb[0].mxu0
    %v405 = vadd.f32 0.0, %v404
    %v406 = vpop.f32.mrb[0].mxu0
    %v407 = vpop.f32.mrb[0].mxu0
    %v408 = vadd.f32 0.0, %v407
    %v409 = vpop.f32.mrb[0].mxu0
    %410 = vmatprep.mubr.bf16.mxu0 %v152
    %411 = vmatmul.mubr.bf16.gmra.mrb[0].mxu0 %v151
    %v412 = vpop.f32.mrb[0].mxu0
    %v413 = vadd.f32 0.0, %v412
    %v414 = vpop.f32.mrb[0].mxu0
    %v415 = vpop.f32.mrb[0].mxu0
    %v416 = vadd.f32 0.0, %v415
    %v417 = vpop.f32.mrb[0].mxu0
    %418 = vmatprep.mubr.bf16.mxu0 %v154
    %419 = vmatmul.mubr.bf16.gmra.mrb[0].mxu0 %v153
    %v420 = vpop.f32.mrb[0].mxu0
    %v421 = vadd.f32 0.0, %v420
    %v422 = vpop.f32.mrb[0].mxu0
    %v423 = vpop.f32.mrb[0].mxu0
    %v424 = vadd.f32 0.0, %v423
    %v425 = vpop.f32.mrb[0].mxu0
    %426 = vmatprep.mubr.bf16.mxu0 %v156
    %427 = vmatmul.mubr.bf16.gmra.mrb[0].mxu0 %v155
    %v428 = vpop.f32.mrb[0].mxu0
    %v429 = vadd.f32 0.0, %v428
    %v430 = vpop.f32.mrb[0].mxu0
    %v431 = vpop.f32.mrb[0].mxu0
    %v432 = vadd.f32 0.0, %v431
    %v433 = vpop.f32.mrb[0].mxu0
    %434 = vmatprep.mubr.bf16.mxu0 %v158
    %435 = vmatmul.mubr.bf16.gmra.mrb[0].mxu0 %v157
    %v436 = vpop.f32.mrb[0].mxu0
    %v437 = vadd.f32 0.0, %v436
    %v438 = vpop.f32.mrb[0].mxu0
    %v439 = vpop.f32.mrb[0].mxu0
    %v440 = vadd.f32 0.0, %v439
    %v441 = vpop.f32.mrb[0].mxu0
    %442 = vmatprep.mubr.bf16.mxu0 %v160
    %443 = vmatmul.mubr.bf16.gmra.mrb[0].mxu0 %v159
    %v444 = vpop.f32.mrb[0].mxu0
    %v445 = vadd.f32 0.0, %v444
    %v446 = vpop.f32.mrb[0].mxu0
    %v447 = vpop.f32.mrb[0].mxu0
    %v448 = vadd.f32 0.0, %v447
    %v449 = vpop.f32.mrb[0].mxu0
    %450 = vmatprep.mubr.bf16.mxu0 %v162
    %451 = vmatmul.mubr.bf16.gmra.mrb[0].mxu0 %v161
    %v452 = vpop.f32.mrb[0].mxu0
    %v453 = vadd.f32 0.0, %v452
    %v454 = vpop.f32.mrb[0].mxu0
    %v455 = vpop.f32.mrb[0].mxu0
    %v456 = vadd.f32 0.0, %v455
    %v457 = vpop.f32.mrb[0].mxu0
    %458 = vmatprep.mubr.bf16.mxu0 %v164
    %459 = vmatmul.mubr.bf16.gmra.mrb[0].mxu0 %v163
    %v460 = vpop.f32.mrb[0].mxu0
    %v461 = vadd.f32 0.0, %v460
    %v462 = vpop.f32.mrb[0].mxu0
    %v463 = vpop.f32.mrb[0].mxu0
    %v464 = vadd.f32 0.0, %v463
    %v465 = vpop.f32.mrb[0].mxu0
    %466 = vmatprep.mubr.bf16.mxu0 %v166
    %467 = vmatmul.mubr.bf16.gmra.mrb[0].mxu0 %v165
    %v468 = vpop.f32.mrb[0].mxu0
    %v469 = vadd.f32 0.0, %v468
    %v470 = vpop.f32.mrb[0].mxu0
    %v471 = vpop.f32.mrb[0].mxu0
    %v472 = vadd.f32 0.0, %v471
    %v473 = vpop.f32.mrb[0].mxu0
    %474 = vmatprep.mubr.bf16.mxu0 %v168
    %475 = vmatmul.mubr.bf16.gmra.mrb[0].mxu0 %v167
    %v476 = vpop.f32.mrb[0].mxu0
    %v477 = vadd.f32 0.0, %v476
    %v478 = vpop.f32.mrb[0].mxu0
    %v479 = vpop.f32.mrb[0].mxu0
    %v480 = vadd.f32 0.0, %v479
    %v481 = vpop.f32.mrb[0].mxu0
    %482 = vmatprep.mubr.bf16.mxu0 %v170
    %483 = vmatmul.mubr.bf16.gmra.mrb[0].mxu0 %v169
    %v484 = vpop.f32.mrb[0].mxu0
    %v485 = vadd.f32 0.0, %v484
    %v486 = vpop.f32.mrb[0].mxu0
    %v487 = vpop.f32.mrb[0].mxu0
    %v488 = vadd.f32 0.0, %v487
    %v489 = vpop.f32.mrb[0].mxu0
    %490 = vmatprep.mubr.bf16.mxu0 %v172
    %491 = vmatmul.mubr.bf16.gmra.mrb[0].mxu0 %v171
    %v492 = vpop.f32.mrb[0].mxu0
    %v493 = vadd.f32 0.0, %v492
    %v494 = vpop.f32.mrb[0].mxu0
    %v495 = vpop.f32.mrb[0].mxu0
    %v496 = vadd.f32 0.0, %v495
    %v497 = vpop.f32.mrb[0].mxu0
    %498 = vdwg.mxu0
    %v499 = vadd.f32 %v210, %v373
    %v500 = vadd.f32 %v211, %v376
    %v501 = vadd.f32 %v212, %v381
    %v502 = vadd.f32 %v213, %v384
    %v503 = vadd.f32 %v214, %v389
    %v504 = vadd.f32 %v215, %v392
    %v505 = vadd.f32 %v216, %v397
    %v506 = vadd.f32 %v217, %v400
    %v507 = vadd.f32 %v218, %v405
    %v508 = vadd.f32 %v219, %v408
    %v509 = vadd.f32 %v220, %v413
    %v510 = vadd.f32 %v221, %v416
    %v511 = vadd.f32 %v222, %v421
    %v512 = vadd.f32 %v223, %v424
    %v513 = vadd.f32 %v224, %v429
    %v514 = vadd.f32 %v225, %v432
    %v515 = vadd.f32 %v226, %v437
    %v516 = vadd.f32 %v227, %v440
    %v517 = vadd.f32 %v228, %v445
    %v518 = vadd.f32 %v229, %v448
    %v519 = vadd.f32 %v230, %v453
    %v520 = vadd.f32 %v231, %v456
    %v521 = vadd.f32 %v232, %v461
    %v522 = vadd.f32 %v233, %v464
    %v523 = vadd.f32 %v234, %v469
    %v524 = vadd.f32 %v235, %v472
    %v525 = vadd.f32 %v236, %v477
    %v526 = vadd.f32 %v237, %v480
    %v527 = vadd.f32 %v238, %v485
    %v528 = vadd.f32 %v239, %v488
    %v529 = vadd.f32 %v240, %v493
    %v530 = vadd.f32 %v241, %v496
    %531 = vst [vmem:[#allocation7] sm:$0xff] %v499
    %532 = vst [vmem:[#allocation7 + $0x8] sm:$0xff] %v500
    %533 = vst [vmem:[#allocation7 + $0x10] sm:$0xff] %v501
    %534 = vst [vmem:[#allocation7 + $0x18] sm:$0xff] %v502
    %535 = vst [vmem:[#allocation7 + $0x20] sm:$0xff] %v503
    %536 = vst [vmem:[#allocation7 + $0x28] sm:$0xff] %v504
    %537 = vst [vmem:[#allocation7 + $0x30] sm:$0xff] %v505
    %538 = vst [vmem:[#allocation7 + $0x38] sm:$0xff] %v506
    %539 = vst [vmem:[#allocation7 + $0x40] sm:$0xff] %v507
    %540 = vst [vmem:[#allocation7 + $0x48] sm:$0xff] %v508
    %541 = vst [vmem:[#allocation7 + $0x50] sm:$0xff] %v509
    %542 = vst [vmem:[#allocation7 + $0x58] sm:$0xff] %v510
    %543 = vst [vmem:[#allocation7 + $0x60] sm:$0xff] %v511
    %544 = vst [vmem:[#allocation7 + $0x68] sm:$0xff] %v512
    %545 = vst [vmem:[#allocation7 + $0x70] sm:$0xff] %v513
    %546 = vst [vmem:[#allocation7 + $0x78] sm:$0xff] %v514
    %547 = vst [vmem:[#allocation7 + $0x80] sm:$0xff] %v515
    %548 = vst [vmem:[#allocation7 + $0x88] sm:$0xff] %v516
    %549 = vst [vmem:[#allocation7 + $0x90] sm:$0xff] %v517
    %550 = vst [vmem:[#allocation7 + $0x98] sm:$0xff] %v518
    %551 = vst [vmem:[#allocation7 + $0xa0] sm:$0xff] %v519
    %552 = vst [vmem:[#allocation7 + $0xa8] sm:$0xff] %v520
    %553 = vst [vmem:[#allocation7 + $0xb0] sm:$0xff] %v521
    %554 = vst [vmem:[#allocation7 + $0xb8] sm:$0xff] %v522
    %555 = vst [vmem:[#allocation7 + $0xc0] sm:$0xff] %v523
    %556 = vst [vmem:[#allocation7 + $0xc8] sm:$0xff] %v524
    %557 = vst [vmem:[#allocation7 + $0xd0] sm:$0xff] %v525
    %558 = vst [vmem:[#allocation7 + $0xd8] sm:$0xff] %v526
    %559 = vst [vmem:[#allocation7 + $0xe0] sm:$0xff] %v527
    %560 = vst [vmem:[#allocation7 + $0xe8] sm:$0xff] %v528
    %561 = vst [vmem:[#allocation7 + $0xf0] sm:$0xff] %v529
    %562 = vst [vmem:[#allocation7 + $0xf8] sm:$0xff] %v530
    // Predicated region
    $region22: #{tpu_custom_call.1} parent=1 // pred_check
      _
    $region23: #{tpu_custom_call.1} parent=1 // pred_check_branch
      %564 = sbr.rel (0) target = $region25
    $region24: #{tpu_custom_call.1} parent=1 // pred_region
      %s566 = ssub.s32 4096, 4096
      %567 = vsyncadd [#allocation4], %s566
      %s568 = sshll.u32 [#allocation7], 4
      %s569 = int_to_ptr.vmem [resolvable:$true] %s568
      %574 = dma.vmem_to_hbm [thread:$0]  %s569, 4096, %s2, [#allocation4], 128, 128, 8
    $region25: #{tpu_custom_call.1} parent=1 // pred_fallthru
      _
    // Predicated region
    $region26: #{tpu_custom_call.1} parent=1 // pred_check
      _
    $region27: #{tpu_custom_call.1} parent=1 // pred_check_branch
      %576 = sbr.rel (0) target = $region29
    $region28: #{tpu_custom_call.1} parent=1 // pred_region
      %577 = dma.done [#allocation4], 4096
    $region29: #{tpu_custom_call.1} parent=1 // pred_fallthru
      _
    %578 = vsyncpa [#allocation3], 1
    %579 = vsyncpa [#allocation6], 1
    %580 = vsyncpa [#allocation4], 1

</llo_original>
